<compile_context>
chip_gen: v7x
topology: tpu7x:2x2x1
jax: 0.10.0
libtpu: 0.0.40
codegen_flags: <defaults>
</compile_context>

<pallas_src>
import jax
import jax.numpy as jnp
from jax.experimental import pallas as pl
from jax.experimental.pallas import tpu as pltpu


def _popart_linear_kernel(x_ref, w_ref, b_ref, out_ref):
    x = x_ref[...]            # (TM, K)
    w = w_ref[...]            # (N, K)  -- PyTorch Linear layout; MXU does the transpose
    acc = jax.lax.dot_general(
        x, w,
        dimension_numbers=(((1,), (1,)), ((), ())),   # contract x.K with w.K
        preferred_element_type=jnp.float32,
    )                         # (TM, N) f32
    out_ref[...] = (acc + b_ref[...]).astype(out_ref.dtype)


def popart_forward(x, weight, bias, *, block_m=512):
    """PopArt forward pass: x @ weight.T + bias (F.linear semantics).

    x:      (..., num_inputs)          float32
    weight: (num_outputs, num_inputs)  (PyTorch Linear layout, NOT pre-transposed)
    bias:   (num_outputs,)
    """
    N, K2 = weight.shape
    lead_shape = x.shape[:-1]
    K = x.shape[-1]
    assert K == K2, "weight/input feature mismatch"

    x2 = x.reshape(-1, K)
    B = x2.shape[0]

    # Batch tile: full batch for small B (block == full array is always legal),
    # otherwise a sublane-aligned tile so DMA/compute double-buffer and VMEM
    # stays bounded (fits comfortably inside v7x's 64 MiB too).
    if B <= block_m:
        tm = B
    else:
        tm = max(8, (block_m // 8) * 8)
    grid_m = pl.cdiv(B, tm)

    b2 = bias.reshape(1, N)

    flops = 2 * B * K * N
    bytes_accessed = 4 * (B * K + N * K + N + B * N)

    out = pl.pallas_call(
        _popart_linear_kernel,
        out_shape=jax.ShapeDtypeStruct((B, N), x.dtype),
        grid=(grid_m,),
        in_specs=[
            pl.BlockSpec((tm, K), lambda i: (i, 0)),   # batch-tiled activations
            pl.BlockSpec((N, K), lambda i: (0, 0)),    # weight resident across steps
            pl.BlockSpec((1, N), lambda i: (0, 0)),    # bias resident across steps
        ],
        out_specs=pl.BlockSpec((tm, N), lambda i: (i, 0)),
        compiler_params=pltpu.CompilerParams(
            dimension_semantics=("parallel",),
        ),
        cost_estimate=pl.CostEstimate(
            flops=flops, transcendentals=0, bytes_accessed=bytes_accessed,
        ),
    )(x2, weight, b2)
    return out.reshape(*lead_shape, N)


if __name__ == "__main__":
    key = jax.random.PRNGKey(0)
    k_x, k_w, k_b, k_x2 = jax.random.split(key, 4)

    # Small shapes consistent with PopArt(input_shape=32, output_shape=8)
    B = 2
    num_inputs = 32
    num_outputs = 8

    x = jax.random.normal(k_x, (B, num_inputs), dtype=jnp.float32)

    # Deterministic stand-ins for kaiming_uniform_ / uniform_ init
    bound_w = (6.0 / num_inputs) ** 0.5
    weight = jax.random.uniform(
        k_w, (num_outputs, num_inputs), dtype=jnp.float32,
        minval=-bound_w, maxval=bound_w)
    bound_b = 1.0 / (num_inputs ** 0.5)
    bias = jax.random.uniform(
        k_b, (num_outputs,), dtype=jnp.float32, minval=-bound_b, maxval=bound_b)

    out = popart_forward(x, weight, bias)
    jax.block_until_ready(out)

    # Reference check (pure JAX) -- small-batch / single-block path
    ref = x @ weight.T + bias
    assert out.shape == ref.shape
    assert jnp.allclose(out, ref, atol=1e-5, rtol=1e-5)

    # Exercise the batch-tiled multi-block path (non-multiple batch too)
    B2 = 1000
    x2 = jax.random.normal(k_x2, (B2, num_inputs), dtype=jnp.float32)
    out2 = popart_forward(x2, weight, bias, block_m=512)
    jax.block_until_ready(out2)
    ref2 = x2 @ weight.T + bias
    assert jnp.allclose(out2, ref2, atol=1e-4, rtol=1e-5)

    # Exercise the higher-rank (flattened leading dims) path
    x3 = x2.reshape(10, 100, num_inputs)
    out3 = popart_forward(x3, weight, bias, block_m=512)
    jax.block_until_ready(out3)
    ref3 = ref2.reshape(10, 100, num_outputs)
    assert out3.shape == ref3.shape
    assert jnp.allclose(out3, ref3, atol=1e-4, rtol=1e-5)

    # TODO(synk): PopArt.update/normalize/denormalize mutate running stats and
    # are not part of forward(); they are intentionally not implemented here.
    print("KERNEL_OK")
</pallas_src>

<mosaic_0001>
module attributes {stable_mosaic.version = 11 : i64} {
  func.func @_popart_linear_kernel(%arg0: i32, %arg1: memref<2x32xf32, #tpu.memory_space<vmem>>, %arg2: memref<8x32xf32, #tpu.memory_space<vmem>>, %arg3: memref<1x8xf32, #tpu.memory_space<vmem>>, %arg4: memref<2x8xf32, #tpu.memory_space<vmem>>) attributes {dimension_semantics = [#tpu.dimension_semantics<parallel>], iteration_bounds = array<i64: 1>, scalar_prefetch = 0 : i64, scratch_operands = 0 : i64, tpu.core_type = #tpu.core_type<tc>, window_params = [{transform_indices = @transform_0, window_bounds = array<i64: 2, 32>}, {pipeline_mode = #tpu.pipeline_mode<synchronous>, transform_indices = @transform_1, window_bounds = array<i64: 8, 32>}, {pipeline_mode = #tpu.pipeline_mode<synchronous>, transform_indices = @transform_2, window_bounds = array<i64: 1, 8>}, {transform_indices = @transform_3, window_bounds = array<i64: 2, 8>}]} {
    %c0 = arith.constant 0 : index
    %c0_0 = arith.constant 0 : index
    %0 = vector.load %arg1[%c0, %c0_0] : memref<2x32xf32, #tpu.memory_space<vmem>>, vector<2x32xf32>
    %c0_1 = arith.constant 0 : index
    %c0_2 = arith.constant 0 : index
    %1 = vector.load %arg2[%c0_1, %c0_2] : memref<8x32xf32, #tpu.memory_space<vmem>>, vector<8x32xf32>
    %cst = arith.constant dense<0.000000e+00> : vector<2x8xf32>
    %2 = tpu.matmul %0, %1, %cst {dimension_numbers = #tpu.dot_dimension_numbers<[1], [1], [0], [0], [0, 0, 1, 0], [], []>} : vector<2x32xf32>, vector<8x32xf32>, vector<2x8xf32> -> vector<2x8xf32>
    %c0_3 = arith.constant 0 : index
    %c0_4 = arith.constant 0 : index
    %3 = vector.load %arg3[%c0_3, %c0_4] : memref<1x8xf32, #tpu.memory_space<vmem>>, vector<1x8xf32>
    %4 = vector.broadcast %3 : vector<1x8xf32> to vector<2x8xf32>
    %5 = arith.addf %2, %4 : vector<2x8xf32>
    %c0_5 = arith.constant 0 : index
    %c0_6 = arith.constant 0 : index
    %6 = vector.load %arg4[%c0_5, %c0_6] : memref<2x8xf32, #tpu.memory_space<vmem>>, vector<2x8xf32>
    tpu.vector_store %arg4[%c0_5, %c0_6], %5 {strides = array<i32>} : memref<2x8xf32, #tpu.memory_space<vmem>>, vector<2x8xf32>,
    return
  }
  func.func @transform_0(%arg0: i32) -> (i32, i32) {
    %c0_i32 = arith.constant 0 : i32
    %c0_i32_0 = arith.constant 0 : i32
    return %arg0, %c0_i32 : i32, i32
  }
  func.func @transform_1(%arg0: i32) -> (i32, i32) {
    %c0_i32 = arith.constant 0 : i32
    %c0_i32_0 = arith.constant 0 : i32
    %c0_i32_1 = arith.constant 0 : i32
    return %c0_i32, %c0_i32_0 : i32, i32
  }
  func.func @transform_2(%arg0: i32) -> (i32, i32) {
    %c0_i32 = arith.constant 0 : i32
    %c0_i32_0 = arith.constant 0 : i32
    %c0_i32_1 = arith.constant 0 : i32
    return %c0_i32, %c0_i32_0 : i32, i32
  }
  func.func @transform_3(%arg0: i32) -> (i32, i32) {
    %c0_i32 = arith.constant 0 : i32
    %c0_i32_0 = arith.constant 0 : i32
    return %arg0, %c0_i32 : i32, i32
  }
}

</mosaic_0001>

<llo_original>
// kernel: tpu_custom_call.1
$region0: #{tpu_custom_call.1}
  #allocation0 [shape = 'u32[]', space=smem, size = 0x4, offset = 0x4, fixed_abs, tag = 'smem constant byte address 0x4 - core index']
  #allocation1 [shape = 'u32[144,128]{1,0:T(1,128)}', space=vmem, size = 0x12000, scoped, tag = 'internal scratch']
  %s0 = inlined_call_operand.hbm [shape: f32[2,32], index: 0, kind: input, shape index: {}]
  %s1 = inlined_call_operand.hbm [shape: f32[8,32], index: 1, kind: input, shape index: {}]
  %s2 = inlined_call_operand.vmem [shape: f32[1,8], index: 2, kind: input, shape index: {}]
  %s3 = inlined_call_operand.hbm [shape: f32[2,8], index: 3, kind: output, shape index: {}]
  %s4 = sld [smem:[#allocation0]]
  $region30: #{tpu_custom_call.1} parent=0
    _
  %s6 = ssub.s32 1, %s4
  %s7 = scalar_select 0, %s6, %s4
  $region1: #{tpu_custom_call.1} parent=0
    #allocation2 [shape = 'u8[1024]{0}', space=vmem, size = 0x400, scoped, tag = 'input window, operand 0, single buffered']
    #allocation3 [shape = 's32[1]{0}', space=sflag, size = 0x4, scoped, tag = 'scoped memory for tpu_custom_call.1']
    #allocation4 [shape = 's32[1]{0}', space=sflag, size = 0x4, scoped, tag = 'scoped memory for tpu_custom_call.1']
    #allocation5 [shape = 'u8[4096]{0}', space=vmem, size = 0x1000, scoped, tag = 'input window, operand 1, single buffered']
    #allocation6 [shape = 's32[1]{0}', space=sflag, size = 0x4, scoped, tag = 'scoped memory for tpu_custom_call.1']
    #allocation7 [shape = 'u8[1024]{0}', space=vmem, size = 0x400, scoped, tag = 'output window, operand 0, single buffered']
    %8 = vsyncpa [#allocation3], 0
    %9 = vsyncpa [#allocation6], 0
    %10 = vsyncpa [#allocation4], 0
    // Predicated region
    $region2: #{tpu_custom_call.1} parent=1 // pred_check
      _
    $region3: #{tpu_custom_call.1} parent=1 // pred_check_branch
      %12 = sbr.rel (0) target = $region5
    $region4: #{tpu_custom_call.1} parent=1 // pred_region
      %s14 = ssub.s32 32, 32
      %15 = vsyncadd [#allocation3], %s14
      %s17 = sshll.u32 [#allocation2], 4
      %s18 = int_to_ptr.vmem [resolvable:$true] %s17
      %20 = dma.hbm_to_vmem [thread:$0]  %s0, 32, %s18, [#allocation3]
    $region5: #{tpu_custom_call.1} parent=1 // pred_fallthru
      _
    // Predicated region
    $region6: #{tpu_custom_call.1} parent=1 // pred_check
      _
    $region7: #{tpu_custom_call.1} parent=1 // pred_check_branch
      %22 = sbr.rel (0) target = $region9
    $region8: #{tpu_custom_call.1} parent=1 // pred_region
      %s24 = ssub.s32 128, 128
      %25 = vsyncadd [#allocation6], %s24
      %s27 = sshll.u32 [#allocation5], 4
      %s28 = int_to_ptr.vmem [resolvable:$true] %s27
      %30 = dma.hbm_to_vmem [thread:$0]  %s1, 128, %s28, [#allocation6]
    $region9: #{tpu_custom_call.1} parent=1 // pred_fallthru
      _
    // Predicated region
    $region10: #{tpu_custom_call.1} parent=1 // pred_check
      _
    $region11: #{tpu_custom_call.1} parent=1 // pred_check_branch
      %32 = sbr.rel (0) target = $region13
    $region12: #{tpu_custom_call.1} parent=1 // pred_region
      _
    $region13: #{tpu_custom_call.1} parent=1 // pred_fallthru
      _
    // Predicated region
    $region14: #{tpu_custom_call.1} parent=1 // pred_check
      _
    $region15: #{tpu_custom_call.1} parent=1 // pred_check_branch
      %34 = sbr.rel (0) target = $region17
    $region16: #{tpu_custom_call.1} parent=1 // pred_region
      %35 = dma.done [#allocation3], 32
    $region17: #{tpu_custom_call.1} parent=1 // pred_fallthru
      _
    // Predicated region
    $region18: #{tpu_custom_call.1} parent=1 // pred_check
      _
    $region19: #{tpu_custom_call.1} parent=1 // pred_check_branch
      %37 = sbr.rel (0) target = $region21
    $region20: #{tpu_custom_call.1} parent=1 // pred_region
      %38 = dma.done [#allocation6], 128
    $region21: #{tpu_custom_call.1} parent=1 // pred_fallthru
      _
    %v39 = vld [vmem:[#allocation2] sm:$0x3]
    %v40 = vld [vmem:[#allocation5] sm:$0xff]
    %v41 = vld [vmem:[%s2] sm:$0x1]
    %v43 = vlaneseq
    %v44 = vshrl.u32 %v43, 7
    %v45 = vsub.s32 0, %v44
    %v46 = vrot.slane %v41, %v45
    %vm48 = vcmask 261120
    %v50 = vsel %vm48, %v39, 0
    %v53 = vsel %vm48, %v40, 0
    %55 = vmatprep.subr.mxu0 0.0
    %56 = vmatpush1.xpose.msra.mxu0 %v53
    %57 = vmatprep.subr.mxu0 0.0
    %58 = vmatpush1.xpose.msra.mxu0 0.0
    %59 = vmatprep.subr.mxu0 0.0
    %60 = vmatpush1.xpose.msra.mxu0 0.0
    %61 = vmatprep.subr.mxu0 0.0
    %62 = vmatpush1.xpose.msra.mxu0 0.0
    %63 = vmatprep.subr.mxu0 0.0
    %64 = vmatpush1.xpose.msra.mxu0 0.0
    %65 = vmatprep.subr.mxu0 0.0
    %66 = vmatpush1.xpose.msra.mxu0 0.0
    %67 = vmatprep.subr.mxu0 0.0
    %68 = vmatpush1.xpose.msra.mxu0 0.0
    %69 = vmatprep.subr.mxu0 0.0
    %70 = vmatpush1.xpose.msra.mxu0 0.0
    %71 = vmatprep.subr.mxu0 0.0
    %72 = vmatpush1.xpose.msra.mxu0 0.0
    %73 = vmatprep.subr.mxu0 0.0
    %74 = vmatpush1.xpose.msra.mxu0 0.0
    %75 = vmatprep.subr.mxu0 0.0
    %76 = vmatpush1.xpose.msra.mxu0 0.0
    %77 = vmatprep.subr.mxu0 0.0
    %78 = vmatpush1.xpose.msra.mxu0 0.0
    %79 = vmatprep.subr.mxu0 0.0
    %80 = vmatpush1.xpose.msra.mxu0 0.0
    %81 = vmatprep.subr.mxu0 0.0
    %82 = vmatpush1.xpose.msra.mxu0 0.0
    %83 = vmatprep.subr.mxu0 0.0
    %84 = vmatpush1.xpose.msra.mxu0 0.0
    %85 = vmatprep.subr.mxu0 0.0
    %86 = vmatpush1.xpose.msra.mxu0 0.0
    %87 = vmatprep.subr.mxu0 0.0
    %88 = vmatpush1.xpose.msra.mxu0 0.0
    %89 = vmatprep.subr.mxu0 0.0
    %90 = vmatpush1.xpose.msra.mxu0 0.0
    %91 = vmatprep.subr.mxu0 0.0
    %92 = vmatpush1.xpose.msra.mxu0 0.0
    %93 = vmatprep.subr.mxu0 0.0
    %94 = vmatpush1.xpose.msra.mxu0 0.0
    %95 = vmatprep.subr.mxu0 0.0
    %96 = vmatpush1.xpose.msra.mxu0 0.0
    %97 = vmatprep.subr.mxu0 0.0
    %98 = vmatpush1.xpose.msra.mxu0 0.0
    %99 = vmatprep.subr.mxu0 0.0
    %100 = vmatpush1.xpose.msra.mxu0 0.0
    %101 = vmatprep.subr.mxu0 0.0
    %102 = vmatpush1.xpose.msra.mxu0 0.0
    %103 = vmatprep.subr.mxu0 0.0
    %104 = vmatpush1.xpose.msra.mxu0 0.0
    %105 = vmatprep.subr.mxu0 0.0
    %106 = vmatpush1.xpose.msra.mxu0 0.0
    %107 = vmatprep.subr.mxu0 0.0
    %108 = vmatpush1.xpose.msra.mxu0 0.0
    %109 = vmatprep.subr.mxu0 0.0
    %110 = vmatpush1.xpose.msra.mxu0 0.0
    %111 = vmatprep.subr.mxu0 0.0
    %112 = vmatpush1.xpose.msra.mxu0 0.0
    %113 = vmatprep.subr.mxu0 0.0
    %114 = vmatpush1.xpose.msra.mxu0 0.0
    %115 = vmatprep.subr.mxu0 0.0
    %116 = vmatpush1.xpose.msra.mxu0 0.0
    %117 = vmatprep.subr.mxu0 0.0
    %118 = vmatpush1.xpose.msra.mxu0 0.0
    %119 = vmatprep.mubr.f32.mxu0 0.0
    %120 = vmatmul.mubr.f32.gmra.mrb[0].mxu0 %v50
    %v121 = vpop.f32.mrb[0].mxu0
    %v122 = vadd.f32 %v46, %v121
    %v123 = vpop.f32.mrb[0].mxu0
    %124 = vdwg.mxu0
    %vm125 = vcmask 58368
    %126 = vst.msk [vmem:[#allocation7] sm:$0x3] %vm125, %v122
    // Predicated region
    $region22: #{tpu_custom_call.1} parent=1 // pred_check
      _
    $region23: #{tpu_custom_call.1} parent=1 // pred_check_branch
      %128 = sbr.rel (0) target = $region25
    $region24: #{tpu_custom_call.1} parent=1 // pred_region
      %s130 = ssub.s32 32, 32
      %131 = vsyncadd [#allocation4], %s130
      %s133 = sshll.u32 [#allocation7], 4
      %s134 = int_to_ptr.vmem [resolvable:$true] %s133
      %136 = dma.vmem_to_hbm [thread:$0]  %s134, 32, %s3, [#allocation4]
    $region25: #{tpu_custom_call.1} parent=1 // pred_fallthru
      _
    // Predicated region
    $region26: #{tpu_custom_call.1} parent=1 // pred_check
      _
    $region27: #{tpu_custom_call.1} parent=1 // pred_check_branch
      %138 = sbr.rel (0) target = $region29
    $region28: #{tpu_custom_call.1} parent=1 // pred_region
      %139 = dma.done [#allocation4], 32
    $region29: #{tpu_custom_call.1} parent=1 // pred_fallthru
      _
    %140 = vsyncpa [#allocation3], 1
    %141 = vsyncpa [#allocation6], 1
    %142 = vsyncpa [#allocation4], 1

</llo_original>
